<compile_context>
chip_gen: v5e
topology: v5e:2x2
jax: 0.10.0
libtpu: 0.0.40
codegen_flags: <defaults>
</compile_context>

<pallas_src>
import jax
import jax.numpy as jnp
from jax.experimental import pallas as pl
from jax.experimental.pallas import tpu as pltpu


def _round_up(n: int, m: int) -> int:
    return ((n + m - 1) // m) * m


def residual_mlp_kernel(x_ref, w1_ref, b1_ref, w2_ref, b2_ref, o_ref):
    # x_ref: (TM, D) f32 | w1_ref: (D, H) bf16 | b1_ref: (1, H) f32
    # w2_ref: (H, D) bf16 | b2_ref: (1, D) f32 | o_ref: (TM, D) f32
    #
    # fn(x) = Linear -> GELU -> Linear; MXU gets bf16 operands, f32 accumulation.
    h = jnp.dot(x_ref[...].astype(jnp.bfloat16), w1_ref[...],
                preferred_element_type=jnp.float32)
    # Bias add in f32, GELU in bf16 (h feeds the second matmul in bf16 anyway;
    # bf16 halves the binding VPU/EUP elementwise work on v6e/v7x).
    # NOTE: tanh-approx GELU (jax.nn.gelu default); PyTorch nn.GELU defaults to
    # exact erf -- the difference is tiny and matches the JAX reference below.
    h = jax.nn.gelu((h + b1_ref[...]).astype(jnp.bfloat16))
    y = jnp.dot(h, w2_ref[...], preferred_element_type=jnp.float32)
    # ResidualAdd: fn(x) + x -- residual re-read from the ref only at the end
    # so no f32 copy of the whole tile stays live across both matmuls.
    o_ref[...] = (y + b2_ref[...] + x_ref[...]).astype(o_ref.dtype)


def prepare_residual_mlp_params(w1, b1, w2, b2):
    """Pad D/H to multiples of 128 and cast weights to bf16 *once*.

    Call at setup time and reuse the result: this keeps the per-call path free
    of weight convert/pad passes over HBM.
    """
    D, H = w1.shape
    Dp, Hp = _round_up(D, 128), _round_up(H, 128)
    if (Dp, Hp) != (D, H):
        w1 = jnp.pad(w1, ((0, Dp - D), (0, Hp - H)))
        w2 = jnp.pad(w2, ((0, Hp - H), (0, Dp - D)))
        b1 = jnp.pad(b1, ((0, 0), (0, Hp - H)))
        b2 = jnp.pad(b2, ((0, 0), (0, Dp - D)))
    return (w1.astype(jnp.bfloat16), b1.astype(jnp.float32),
            w2.astype(jnp.bfloat16), b2.astype(jnp.float32))


def _vmem_capacity_bytes() -> int:
    try:
        cap = getattr(pltpu.get_tpu_info(), "vmem_capacity_bytes", None)
        if cap:
            return int(cap)
    except Exception:
        pass
    return 64 * 1024 * 1024  # conservative (v7x-sized) fallback


def _vmem_need_bytes(tm: int, d: int, h: int) -> int:
    # Conservative estimate: assumes the fallback (double-buffered) weight path.
    weights = 2 * 2 * d * h * 2                   # w1 + w2, bf16, 2 buffers
    biases = 2 * (h + d) * 4
    io_tiles = 2 * 2 * tm * d * 4                 # x + out tiles, double-buffered f32
    interm = tm * h * (4 + 2) + tm * d * 2        # f32 h, bf16 h, bf16 x
    return weights + biases + io_tiles + interm


def _pick_tile_rows(tm_req: int, m: int, d: int, h: int, vmem_budget: int) -> int:
    tm = max(8, min(tm_req, m))
    # Keep >= 2 row tiles on large inputs so the "parallel" M axis can feed
    # both v7x TensorCores, while keeping tiles >= 512 rows (pipeline-step
    # overhead amortization on v5e/v6e).
    if m >= 1024:
        tm = min(tm, max(512, _round_up(pl.cdiv(m, 2), 8)))
    # Shrink until weights + double-buffered tiles + intermediates fit VMEM.
    while tm > 128 and _vmem_need_bytes(tm, d, h) > vmem_budget:
        tm //= 2
    if tm >= m:
        return m
    return max(8, (tm // 8) * 8)


def residual_add_mlp(x, w1, b1, w2, b2, *, tm=1024):
    """out = (Linear -> GELU -> Linear)(x) + x   (ResidualAdd around FeedForward).

    x: (B, S, D) float32.  w1/b1/w2/b2 should ideally be the output of
    prepare_residual_mlp_params (bf16, lane-padded); raw f32 params are also
    accepted and prepared on the fly.
    """
    B, S, D = x.shape
    Dp = _round_up(D, 128)
    if (w1.dtype != jnp.bfloat16 or w1.shape[0] != Dp
            or w1.shape[1] % 128 != 0):
        w1, b1, w2, b2 = prepare_residual_mlp_params(w1, b1, w2, b2)
    Hp = w1.shape[1]

    M = B * S
    x2 = x.reshape(M, D)
    if Dp != D:
        x2 = jnp.pad(x2, ((0, 0), (0, Dp - D)))

    capacity = _vmem_capacity_bytes()
    vmem_budget = max(32 * 1024 * 1024,
                      min(capacity - 12 * 1024 * 1024, int(capacity * 0.80)))
    tm = _pick_tile_rows(tm, M, Dp, Hp, vmem_budget)
    grid = (pl.cdiv(M, tm),)

    cost = pl.CostEstimate(
        flops=4 * M * Dp * Hp,                 # two (M,Dp)x(Dp,Hp)-class matmuls
        transcendentals=M * Hp,                # GELU tanh
        bytes_accessed=2 * M * Dp * 4 + 2 * Dp * Hp * 2 + (Hp + Dp) * 4,
    )
    compiler_params = pltpu.CompilerParams(
        dimension_semantics=("parallel",),
        vmem_limit_bytes=int(vmem_budget),
    )

    # TODO(synk): for very large D*H (resident bf16 weights approaching the VMEM
    # budget, esp. on v7x's 64 MiB) the hidden dim should get its own grid axis
    # instead of keeping both weight matrices fully resident.

    def build(single_buffer_weights: bool):
        def const_spec(shape):
            if single_buffer_weights:
                # Constant index_map: fetched once -> one VMEM buffer is enough.
                return pl.BlockSpec(shape, lambda i: (0, 0),
                                    pipeline_mode=pl.Buffered(1))
            return pl.BlockSpec(shape, lambda i: (0, 0))

        return pl.pallas_call(
            residual_mlp_kernel,
            out_shape=jax.ShapeDtypeStruct((M, Dp), x.dtype),
            grid_spec=pl.GridSpec(
                grid=grid,
                in_specs=[
                    pl.BlockSpec((tm, Dp), lambda i: (i, 0)),   # x tile (pipelined)
                    const_spec((Dp, Hp)),                        # w1 resident
                    const_spec((1, Hp)),                         # b1 resident
                    const_spec((Hp, Dp)),                        # w2 resident
                    const_spec((1, Dp)),                         # b2 resident
                ],
                out_specs=pl.BlockSpec((tm, Dp), lambda i: (i, 0)),
            ),
            compiler_params=compiler_params,
            cost_estimate=cost,
        )

    try:
        out2 = build(True)(x2, w1, b1, w2, b2)
    except Exception:
        # Fallback for JAX builds that reject pipeline_mode=pl.Buffered(1).
        out2 = build(False)(x2, w1, b1, w2, b2)

    if Dp != D:
        out2 = out2[:, :D]
    return out2.reshape(B, S, D)


def _reference(x, w1, b1, w2, b2):
    # Pure-JAX f32 reference of ResidualAdd(FeedForward)(x) = fn(x) + x.
    return jnp.dot(jax.nn.gelu(jnp.dot(x, w1) + b1[0]), w2) + b2[0] + x


if __name__ == "__main__":
    key = jax.random.PRNGKey(0)
    (kx, kw1, kb1, kw2, kb2, kx2,
     kx3, kw3, kb3, kw4, kb4) = jax.random.split(key, 11)

    # --- Test 1: lane-aligned small shapes (B=2, S=8, D=128, H=256). ---
    B, S, D = 2, 8, 128
    H = 2 * D
    x = jax.random.normal(kx, (B, S, D), dtype=jnp.float32)
    w1 = jax.random.normal(kw1, (D, H), dtype=jnp.float32) * (1.0 / jnp.sqrt(D))
    b1 = jax.random.normal(kb1, (1, H), dtype=jnp.float32) * 0.01
    w2 = jax.random.normal(kw2, (H, D), dtype=jnp.float32) * (1.0 / jnp.sqrt(H))
    b2 = jax.random.normal(kb2, (1, D), dtype=jnp.float32) * 0.01

    params = prepare_residual_mlp_params(w1, b1, w2, b2)   # bf16 cast ONCE

    out = residual_add_mlp(x, *params)
    jax.block_until_ready(out)
    ref = _reference(x, w1, b1, w2, b2)
    # bf16 MXU operands / bf16 GELU with f32 accumulation -> loosened tolerance.
    assert jnp.allclose(out, ref, atol=5e-2, rtol=5e-2), "mismatch (small)"

    # --- Test 2: multi-tile pipelined path (M = 1024 rows -> >= 2 row tiles). ---
    B2, S2 = 4, 256
    xl = jax.random.normal(kx2, (B2, S2, D), dtype=jnp.float32)
    out_l = residual_add_mlp(xl, *params)
    jax.block_until_ready(out_l)
    ref_l = _reference(xl, w1, b1, w2, b2)
    assert jnp.allclose(out_l, ref_l, atol=5e-2, rtol=5e-2), "mismatch (tiled)"

    # --- Test 3: non-lane-aligned dims exercise the D/H padding path. ---
    B3, S3, D3 = 2, 8, 96
    H3 = 200
    x3 = jax.random.normal(kx3, (B3, S3, D3), dtype=jnp.float32)
    w3 = jax.random.normal(kw3, (D3, H3), dtype=jnp.float32) * (1.0 / jnp.sqrt(D3))
    b3 = jax.random.normal(kb3, (1, H3), dtype=jnp.float32) * 0.01
    w4 = jax.random.normal(kw4, (H3, D3), dtype=jnp.float32) * (1.0 / jnp.sqrt(H3))
    b4 = jax.random.normal(kb4, (1, D3), dtype=jnp.float32) * 0.01
    out_p = residual_add_mlp(x3, w3, b3, w4, b4)            # raw f32 params ok
    jax.block_until_ready(out_p)
    ref_p = _reference(x3, w3, b3, w4, b4)
    assert jnp.allclose(out_p, ref_p, atol=5e-2, rtol=5e-2), "mismatch (padded)"

    print("KERNEL_OK")
</pallas_src>

<mosaic_0001>
module attributes {stable_mosaic.version = 11 : i64} {
  func.func @residual_mlp_kernel(%arg0: i32, %arg1: memref<16x128xf32, #tpu.memory_space<vmem>>, %arg2: memref<128x256xbf16, #tpu.memory_space<vmem>>, %arg3: memref<1x256xf32, #tpu.memory_space<vmem>>, %arg4: memref<256x128xbf16, #tpu.memory_space<vmem>>, %arg5: memref<1x128xf32, #tpu.memory_space<vmem>>, %arg6: memref<16x128xf32, #tpu.memory_space<vmem>>) attributes {dimension_semantics = [#tpu.dimension_semantics<parallel>], iteration_bounds = array<i64: 1>, scalar_prefetch = 0 : i64, scratch_operands = 0 : i64, tpu.core_type = #tpu.core_type<tc>, window_params = [{transform_indices = @transform_0, window_bounds = array<i64: 16, 128>}, {pipeline_mode = #tpu.pipeline_mode<synchronous>, transform_indices = @transform_1, window_bounds = array<i64: 128, 256>}, {pipeline_mode = #tpu.pipeline_mode<synchronous>, transform_indices = @transform_2, window_bounds = array<i64: 1, 256>}, {pipeline_mode = #tpu.pipeline_mode<synchronous>, transform_indices = @transform_3, window_bounds = array<i64: 256, 128>}, {pipeline_mode = #tpu.pipeline_mode<synchronous>, transform_indices = @transform_4, window_bounds = array<i64: 1, 128>}, {transform_indices = @transform_5, window_bounds = array<i64: 16, 128>}]} {
    %c0 = arith.constant 0 : index
    %c0_0 = arith.constant 0 : index
    %0 = vector.load %arg1[%c0, %c0_0] : memref<16x128xf32, #tpu.memory_space<vmem>>, vector<16x128xf32>
    %1 = arith.truncf %0 : vector<16x128xf32> to vector<16x128xbf16>
    %c0_1 = arith.constant 0 : index
    %c0_2 = arith.constant 0 : index
    %2 = vector.load %arg2[%c0_1, %c0_2] : memref<128x256xbf16, #tpu.memory_space<vmem>>, vector<128x256xbf16>
    %cst = arith.constant dense<0.000000e+00> : vector<16x256xf32>
    %3 = tpu.matmul %1, %2, %cst {dimension_numbers = #tpu.dot_dimension_numbers<[1], [0], [0], [1], [0, 0, 1, 1], [], []>} : vector<16x128xbf16>, vector<128x256xbf16>, vector<16x256xf32> -> vector<16x256xf32>
    %c0_3 = arith.constant 0 : index
    %c0_4 = arith.constant 0 : index
    %4 = vector.load %arg3[%c0_3, %c0_4] : memref<1x256xf32, #tpu.memory_space<vmem>>, vector<1x256xf32>
    %5 = vector.broadcast %4 : vector<1x256xf32> to vector<16x256xf32>
    %6 = arith.addf %3, %5 : vector<16x256xf32>
    %7 = arith.truncf %6 : vector<16x256xf32> to vector<16x256xbf16>
    %8 = arith.mulf %7, %7 : vector<16x256xbf16>
    %9 = arith.mulf %7, %8 : vector<16x256xbf16>
    %cst_5 = arith.constant 4.467770e-02 : bf16
    %10 = vector.broadcast %cst_5 : bf16 to vector<16x256xbf16>
    %11 = arith.mulf %10, %9 : vector<16x256xbf16>
    %12 = arith.addf %7, %11 : vector<16x256xbf16>
    %cst_6 = arith.constant 7.968750e-01 : bf16
    %13 = vector.broadcast %cst_6 : bf16 to vector<16x256xbf16>
    %14 = arith.mulf %13, %12 : vector<16x256xbf16>
    %15 = math.tanh %14 : vector<16x256xbf16>
    %cst_7 = arith.constant 1.000000e+00 : bf16
    %16 = vector.broadcast %cst_7 : bf16 to vector<16x256xbf16>
    %17 = arith.addf %16, %15 : vector<16x256xbf16>
    %cst_8 = arith.constant 5.000000e-01 : bf16
    %18 = vector.broadcast %cst_8 : bf16 to vector<16x256xbf16>
    %19 = arith.mulf %18, %17 : vector<16x256xbf16>
    %20 = arith.mulf %7, %19 : vector<16x256xbf16>
    %c0_9 = arith.constant 0 : index
    %c0_10 = arith.constant 0 : index
    %21 = vector.load %arg4[%c0_9, %c0_10] : memref<256x128xbf16, #tpu.memory_space<vmem>>, vector<256x128xbf16>
    %cst_11 = arith.constant dense<0.000000e+00> : vector<16x128xf32>
    %22 = tpu.matmul %20, %21, %cst_11 {dimension_numbers = #tpu.dot_dimension_numbers<[1], [0], [0], [1], [0, 0, 1, 1], [], []>} : vector<16x256xbf16>, vector<256x128xbf16>, vector<16x128xf32> -> vector<16x128xf32>
    %c0_12 = arith.constant 0 : index
    %c0_13 = arith.constant 0 : index
    %23 = vector.load %arg5[%c0_12, %c0_13] : memref<1x128xf32, #tpu.memory_space<vmem>>, vector<1x128xf32>
    %24 = vector.broadcast %23 : vector<1x128xf32> to vector<16x128xf32>
    %25 = arith.addf %22, %24 : vector<16x128xf32>
    %c0_14 = arith.constant 0 : index
    %c0_15 = arith.constant 0 : index
    %26 = vector.load %arg1[%c0_14, %c0_15] : memref<16x128xf32, #tpu.memory_space<vmem>>, vector<16x128xf32>
    %27 = arith.addf %25, %26 : vector<16x128xf32>
    %c0_16 = arith.constant 0 : index
    %c0_17 = arith.constant 0 : index
    %28 = vector.load %arg6[%c0_16, %c0_17] : memref<16x128xf32, #tpu.memory_space<vmem>>, vector<16x128xf32>
    tpu.vector_store %arg6[%c0_16, %c0_17], %27 {strides = array<i32>} : memref<16x128xf32, #tpu.memory_space<vmem>>, vector<16x128xf32>,
    return
  }
  func.func @transform_0(%arg0: i32) -> (i32, i32) {
    %c0_i32 = arith.constant 0 : i32
    %c0_i32_0 = arith.constant 0 : i32
    return %arg0, %c0_i32 : i32, i32
  }
  func.func @transform_1(%arg0: i32) -> (i32, i32) {
    %c0_i32 = arith.constant 0 : i32
    %c0_i32_0 = arith.constant 0 : i32
    %c0_i32_1 = arith.constant 0 : i32
    return %c0_i32, %c0_i32_0 : i32, i32
  }
  func.func @transform_2(%arg0: i32) -> (i32, i32) {
    %c0_i32 = arith.constant 0 : i32
    %c0_i32_0 = arith.constant 0 : i32
    %c0_i32_1 = arith.constant 0 : i32
    return %c0_i32, %c0_i32_0 : i32, i32
  }
  func.func @transform_3(%arg0: i32) -> (i32, i32) {
    %c0_i32 = arith.constant 0 : i32
    %c0_i32_0 = arith.constant 0 : i32
    %c0_i32_1 = arith.constant 0 : i32
    return %c0_i32, %c0_i32_0 : i32, i32
  }
  func.func @transform_4(%arg0: i32) -> (i32, i32) {
    %c0_i32 = arith.constant 0 : i32
    %c0_i32_0 = arith.constant 0 : i32
    %c0_i32_1 = arith.constant 0 : i32
    return %c0_i32, %c0_i32_0 : i32, i32
  }
  func.func @transform_5(%arg0: i32) -> (i32, i32) {
    %c0_i32 = arith.constant 0 : i32
    %c0_i32_0 = arith.constant 0 : i32
    return %arg0, %c0_i32 : i32, i32
  }
}

module attributes {stable_mosaic.version = 11 : i64} {
  func.func @residual_mlp_kernel(%arg0: i32, %arg1: memref<16x128xf32, #tpu.memory_space<vmem>>, %arg2: memref<128x256xbf16, #tpu.memory_space<vmem>>, %arg3: memref<1x256xf32, #tpu.memory_space<vmem>>, %arg4: memref<256x128xbf16, #tpu.memory_space<vmem>>, %arg5: memref<1x128xf32, #tpu.memory_space<vmem>>, %arg6: memref<16x128xf32, #tpu.memory_space<vmem>>) attributes {dimension_semantics = [#tpu.dimension_semantics<parallel>], iteration_bounds = array<i64: 1>, scalar_prefetch = 0 : i64, scratch_operands = 0 : i64, tpu.core_type = #tpu.core_type<tc>, window_params = [{transform_indices = @transform_0, window_bounds = array<i64: 16, 128>}, {pipeline_mode = #tpu.pipeline_mode<synchronous>, transform_indices = @transform_1, window_bounds = array<i64: 128, 256>}, {pipeline_mode = #tpu.pipeline_mode<synchronous>, transform_indices = @transform_2, window_bounds = array<i64: 1, 256>}, {pipeline_mode = #tpu.pipeline_mode<synchronous>, transform_indices = @transform_3, window_bounds = array<i64: 256, 128>}, {pipeline_mode = #tpu.pipeline_mode<synchronous>, transform_indices = @transform_4, window_bounds = array<i64: 1, 128>}, {transform_indices = @transform_5, window_bounds = array<i64: 16, 128>}]} {
    %c0 = arith.constant 0 : index
    %c0_0 = arith.constant 0 : index
    %0 = vector.load %arg1[%c0, %c0_0] : memref<16x128xf32, #tpu.memory_space<vmem>>, vector<16x128xf32>
    %1 = arith.truncf %0 : vector<16x128xf32> to vector<16x128xbf16>
    %c0_1 = arith.constant 0 : index
    %c0_2 = arith.constant 0 : index
    %2 = vector.load %arg2[%c0_1, %c0_2] : memref<128x256xbf16, #tpu.memory_space<vmem>>, vector<128x256xbf16>
    %cst = arith.constant dense<0.000000e+00> : vector<16x256xf32>
    %3 = tpu.matmul %1, %2, %cst {dimension_numbers = #tpu.dot_dimension_numbers<[1], [0], [0], [1], [0, 0, 1, 1], [], []>} : vector<16x128xbf16>, vector<128x256xbf16>, vector<16x256xf32> -> vector<16x256xf32>
    %c0_3 = arith.constant 0 : index
    %c0_4 = arith.constant 0 : index
    %4 = vector.load %arg3[%c0_3, %c0_4] : memref<1x256xf32, #tpu.memory_space<vmem>>, vector<1x256xf32>
    %5 = vector.broadcast %4 : vector<1x256xf32> to vector<16x256xf32>
    %6 = arith.addf %3, %5 : vector<16x256xf32>
    %7 = arith.truncf %6 : vector<16x256xf32> to vector<16x256xbf16>
    %8 = arith.mulf %7, %7 : vector<16x256xbf16>
    %9 = arith.mulf %7, %8 : vector<16x256xbf16>
    %cst_5 = arith.constant 4.467770e-02 : bf16
    %10 = vector.broadcast %cst_5 : bf16 to vector<16x256xbf16>
    %11 = arith.mulf %10, %9 : vector<16x256xbf16>
    %12 = arith.addf %7, %11 : vector<16x256xbf16>
    %cst_6 = arith.constant 7.968750e-01 : bf16
    %13 = vector.broadcast %cst_6 : bf16 to vector<16x256xbf16>
    %14 = arith.mulf %13, %12 : vector<16x256xbf16>
    %15 = math.tanh %14 : vector<16x256xbf16>
    %cst_7 = arith.constant 1.000000e+00 : bf16
    %16 = vector.broadcast %cst_7 : bf16 to vector<16x256xbf16>
    %17 = arith.addf %16, %15 : vector<16x256xbf16>
    %cst_8 = arith.constant 5.000000e-01 : bf16
    %18 = vector.broadcast %cst_8 : bf16 to vector<16x256xbf16>
    %19 = arith.mulf %18, %17 : vector<16x256xbf16>
    %20 = arith.mulf %7, %19 : vector<16x256xbf16>
    %c0_9 = arith.constant 0 : index
    %c0_10 = arith.constant 0 : index
    %21 = vector.load %arg4[%c0_9, %c0_10] : memref<256x128xbf16, #tpu.memory_space<vmem>>, vector<256x128xbf16>
    %cst_11 = arith.constant dense<0.000000e+00> : vector<16x128xf32>
    %22 = tpu.matmul %20, %21, %cst_11 {dimension_numbers = #tpu.dot_dimension_numbers<[1], [0], [0], [1], [0, 0, 1, 1], [], []>} : vector<16x256xbf16>, vector<256x128xbf16>, vector<16x128xf32> -> vector<16x128xf32>
    %c0_12 = arith.constant 0 : index
    %c0_13 = arith.constant 0 : index
    %23 = vector.load %arg5[%c0_12, %c0_13] : memref<1x128xf32, #tpu.memory_space<vmem>>, vector<1x128xf32>
    %24 = vector.broadcast %23 : vector<1x128xf32> to vector<16x128xf32>
    %25 = arith.addf %22, %24 : vector<16x128xf32>
    %c0_14 = arith.constant 0 : index
    %c0_15 = arith.constant 0 : index
    %26 = vector.load %arg1[%c0_14, %c0_15] : memref<16x128xf32, #tpu.memory_space<vmem>>, vector<16x128xf32>
    %27 = arith.addf %25, %26 : vector<16x128xf32>
    %c0_16 = arith.constant 0 : index
    %c0_17 = arith.constant 0 : index
    %28 = vector.load %arg6[%c0_16, %c0_17] : memref<16x128xf32, #tpu.memory_space<vmem>>, vector<16x128xf32>
    tpu.vector_store %arg6[%c0_16, %c0_17], %27 {strides = array<i32>} : memref<16x128xf32, #tpu.memory_space<vmem>>, vector<16x128xf32>,
    return
  }
  func.func @transform_0(%arg0: i32) -> (i32, i32) {
    %c0_i32 = arith.constant 0 : i32
    %c0_i32_0 = arith.constant 0 : i32
    return %arg0, %c0_i32 : i32, i32
  }
  func.func @transform_1(%arg0: i32) -> (i32, i32) {
    %c0_i32 = arith.constant 0 : i32
    %c0_i32_0 = arith.constant 0 : i32
    %c0_i32_1 = arith.constant 0 : i32
    return %c0_i32, %c0_i32_0 : i32, i32
  }
  func.func @transform_2(%arg0: i32) -> (i32, i32) {
    %c0_i32 = arith.constant 0 : i32
    %c0_i32_0 = arith.constant 0 : i32
    %c0_i32_1 = arith.constant 0 : i32
    return %c0_i32, %c0_i32_0 : i32, i32
  }
  func.func @transform_3(%arg0: i32) -> (i32, i32) {
    %c0_i32 = arith.constant 0 : i32
    %c0_i32_0 = arith.constant 0 : i32
    %c0_i32_1 = arith.constant 0 : i32
    return %c0_i32, %c0_i32_0 : i32, i32
  }
  func.func @transform_4(%arg0: i32) -> (i32, i32) {
    %c0_i32 = arith.constant 0 : i32
    %c0_i32_0 = arith.constant 0 : i32
    %c0_i32_1 = arith.constant 0 : i32
    return %c0_i32, %c0_i32_0 : i32, i32
  }
  func.func @transform_5(%arg0: i32) -> (i32, i32) {
    %c0_i32 = arith.constant 0 : i32
    %c0_i32_0 = arith.constant 0 : i32
    return %arg0, %c0_i32 : i32, i32
  }
}

</mosaic_0001>

<llo_original>
// kernel: tpu_custom_call.1
$region0: #{tpu_custom_call.1}
  #allocation0 [shape = 'u32[]', space=smem, size = 0x4, offset = 0x4, fixed_abs, tag = 'smem constant byte address 0x4 - core index']
  #allocation1 [shape = 'u32[72,128]{1,0:T(1,128)}', space=vmem, size = 0x9000, scoped, tag = 'internal scratch']
  %s0 = inlined_call_operand.hbm [shape: f32[16,128], index: 0, kind: input, shape index: {}]
  %s1 = inlined_call_operand.hbm [shape: bf16[128,256], index: 1, kind: input, shape index: {}]
  %s2 = inlined_call_operand.hbm [shape: f32[1,256], index: 2, kind: input, shape index: {}]
  %s3 = inlined_call_operand.hbm [shape: bf16[256,128], index: 3, kind: input, shape index: {}]
  %s4 = inlined_call_operand.vmem [shape: f32[1,128], index: 4, kind: input, shape index: {}]
  %s5 = inlined_call_operand.hbm [shape: f32[16,128], index: 5, kind: output, shape index: {}]
  %s6 = sld [smem:[#allocation0]]
  $region46: #{tpu_custom_call.1} parent=0
    _
  %s8 = ssub.s32 1, %s6
  %s9 = scalar_select 0, %s8, %s6
  $region1: #{tpu_custom_call.1} parent=0
    #allocation2 [shape = 'u8[8192]{0}', space=vmem, size = 0x2000, scoped, tag = 'input window, operand 0, single buffered']
    #allocation3 [shape = 's32[1]{0}', space=sflag, size = 0x4, scoped, tag = 'scoped memory for tpu_custom_call.1']
    #allocation4 [shape = 's32[1]{0}', space=sflag, size = 0x4, scoped, tag = 'scoped memory for tpu_custom_call.1']
    #allocation5 [shape = 'u8[65536]{0}', space=vmem, size = 0x10000, scoped, tag = 'input window, operand 1, single buffered']
    #allocation6 [shape = 's32[1]{0}', space=sflag, size = 0x4, scoped, tag = 'scoped memory for tpu_custom_call.1']
    #allocation7 [shape = 'u8[1024]{0}', space=vmem, size = 0x400, scoped, tag = 'input window, operand 2, single buffered']
    #allocation8 [shape = 'u8[65536]{0}', space=vmem, size = 0x10000, scoped, tag = 'input window, operand 3, single buffered']
    #allocation9 [shape = 's32[1]{0}', space=sflag, size = 0x4, scoped, tag = 'scoped memory for tpu_custom_call.1']
    #allocation10 [shape = 'u8[8192]{0}', space=vmem, size = 0x2000, scoped, tag = 'output window, operand 0, single buffered']
    %10 = vsyncpa [#allocation3], 0
    %11 = vsyncpa [#allocation6], 0
    %12 = vsyncpa [#allocation9], 0
    %13 = vsyncpa [#allocation4], 0
    // Predicated region
    $region2: #{tpu_custom_call.1} parent=1 // pred_check
      _
    $region3: #{tpu_custom_call.1} parent=1 // pred_check_branch
      %15 = sbr.rel (0) target = $region5
    $region4: #{tpu_custom_call.1} parent=1 // pred_region
      %17 = vsyncadd [#allocation3], 0
      %s18 = sshll.u32 %s0, 4
      %s19 = int_to_ptr.hbm [resolvable:$true] %s18
      %s20 = sshll.u32 [#allocation2], 4
      %s21 = int_to_ptr.vmem [resolvable:$true] %s20
      %26 = dma.hbm_to_vmem [thread:$0]  %s19, 256, %s21, [#allocation3], 128, 128, 8
    $region5: #{tpu_custom_call.1} parent=1 // pred_fallthru
      _
    // Predicated region
    $region6: #{tpu_custom_call.1} parent=1 // pred_check
      _
    $region7: #{tpu_custom_call.1} parent=1 // pred_check_branch
      %28 = sbr.rel (0) target = $region9
    $region8: #{tpu_custom_call.1} parent=1 // pred_region
      %30 = vsyncadd [#allocation6], 0
      %s31 = sshll.u32 %s1, 4
      %s32 = int_to_ptr.hbm [resolvable:$true] %s31
      %s33 = sshll.u32 [#allocation5], 4
      %s34 = int_to_ptr.vmem [resolvable:$true] %s33
      %39 = dma.hbm_to_vmem [thread:$0]  %s32, 2048, %s34, [#allocation6], 128, 128, 8
    $region9: #{tpu_custom_call.1} parent=1 // pred_fallthru
      _
    // Predicated region
    $region10: #{tpu_custom_call.1} parent=1 // pred_check
      _
    $region11: #{tpu_custom_call.1} parent=1 // pred_check_branch
      %41 = sbr.rel (0) target = $region13
    $region12: #{tpu_custom_call.1} parent=1 // pred_region
      %43 = vsyncadd [#allocation6], 0
      %s45 = sshll.u32 %s2, 4
      %s46 = int_to_ptr.hbm [resolvable:$true] %s45
      %s47 = sshll.u32 [#allocation7], 4
      %s48 = int_to_ptr.vmem [resolvable:$true] %s47
      %50 = dma.hbm_to_vmem [thread:$0]  %s46, 32, %s48, [#allocation6]
    $region13: #{tpu_custom_call.1} parent=1 // pred_fallthru
      _
    // Predicated region
    $region14: #{tpu_custom_call.1} parent=1 // pred_check
      _
    $region15: #{tpu_custom_call.1} parent=1 // pred_check_branch
      %52 = sbr.rel (0) target = $region17
    $region16: #{tpu_custom_call.1} parent=1 // pred_region
      %54 = vsyncadd [#allocation9], 0
      %s55 = sshll.u32 %s3, 4
      %s56 = int_to_ptr.hbm [resolvable:$true] %s55
      %s57 = sshll.u32 [#allocation8], 4
      %s58 = int_to_ptr.vmem [resolvable:$true] %s57
      %63 = dma.hbm_to_vmem [thread:$0]  %s56, 2048, %s58, [#allocation9], 64, 64, 4
    $region17: #{tpu_custom_call.1} parent=1 // pred_fallthru
      _
    // Predicated region
    $region18: #{tpu_custom_call.1} parent=1 // pred_check
      _
    $region19: #{tpu_custom_call.1} parent=1 // pred_check_branch
      %65 = sbr.rel (0) target = $region21
    $region20: #{tpu_custom_call.1} parent=1 // pred_region
      _
    $region21: #{tpu_custom_call.1} parent=1 // pred_fallthru
      _
    // Predicated region
    $region22: #{tpu_custom_call.1} parent=1 // pred_check
      _
    $region23: #{tpu_custom_call.1} parent=1 // pred_check_branch
      %67 = sbr.rel (0) target = $region25
    $region24: #{tpu_custom_call.1} parent=1 // pred_region
      %69 = dma.done [#allocation3], 256
    $region25: #{tpu_custom_call.1} parent=1 // pred_fallthru
      _
    // Predicated region
    $region26: #{tpu_custom_call.1} parent=1 // pred_check
      _
    $region27: #{tpu_custom_call.1} parent=1 // pred_check_branch
      %71 = sbr.rel (0) target = $region29
    $region28: #{tpu_custom_call.1} parent=1 // pred_region
      %73 = dma.done [#allocation6], 2048
    $region29: #{tpu_custom_call.1} parent=1 // pred_fallthru
      _
    // Predicated region
    $region30: #{tpu_custom_call.1} parent=1 // pred_check
      _
    $region31: #{tpu_custom_call.1} parent=1 // pred_check_branch
      %75 = sbr.rel (0) target = $region33
    $region32: #{tpu_custom_call.1} parent=1 // pred_region
      %77 = dma.done [#allocation6], 32
    $region33: #{tpu_custom_call.1} parent=1 // pred_fallthru
      _
    // Predicated region
    $region34: #{tpu_custom_call.1} parent=1 // pred_check
      _
    $region35: #{tpu_custom_call.1} parent=1 // pred_check_branch
      %79 = sbr.rel (0) target = $region37
    $region36: #{tpu_custom_call.1} parent=1 // pred_region
      %81 = dma.done [#allocation9], 2048
    $region37: #{tpu_custom_call.1} parent=1 // pred_fallthru
      _
    %v82 = vld [vmem:[#allocation2] sm:$0xff]
    %v83 = vld [vmem:[#allocation2 + $0x8] sm:$0xff]
    %v84 = vpack.c.bf16 %v83, %v82
    %v85 = vld [vmem:[#allocation5] sm:$0xff]
    %v86 = vld [vmem:[#allocation5 + $0x8] sm:$0xff]
    %v87 = vld [vmem:[#allocation5 + $0x10] sm:$0xff]
    %v88 = vld [vmem:[#allocation5 + $0x18] sm:$0xff]
    %v89 = vld [vmem:[#allocation5 + $0x20] sm:$0xff]
    %v90 = vld [vmem:[#allocation5 + $0x28] sm:$0xff]
    %v91 = vld [vmem:[#allocation5 + $0x30] sm:$0xff]
    %v92 = vld [vmem:[#allocation5 + $0x38] sm:$0xff]
    %v93 = vld [vmem:[#allocation5 + $0x40] sm:$0xff]
    %v94 = vld [vmem:[#allocation5 + $0x48] sm:$0xff]
    %v95 = vld [vmem:[#allocation5 + $0x50] sm:$0xff]
    %v96 = vld [vmem:[#allocation5 + $0x58] sm:$0xff]
    %v97 = vld [vmem:[#allocation5 + $0x60] sm:$0xff]
    %v98 = vld [vmem:[#allocation5 + $0x68] sm:$0xff]
    %v99 = vld [vmem:[#allocation5 + $0x70] sm:$0xff]
    %v100 = vld [vmem:[#allocation5 + $0x78] sm:$0xff]
    %v101 = vld [vmem:[#allocation7] sm:$0x3]
    %v103 = vperm.slane %v101, 0
    %v104 = vperm.slane %v101, 1
    %v123 = vunpack.c.l.b16 %v85
    %v124 = vunpack.c.h.b16 %v85
    %v125 = vunpack.c.l.b16 %v86
    %v126 = vunpack.c.h.b16 %v86
    %v127 = vunpack.c.l.b16 %v87
    %v128 = vunpack.c.h.b16 %v87
    %v129 = vunpack.c.l.b16 %v88
    %v130 = vunpack.c.h.b16 %v88
    %v131 = vunpack.c.l.b16 %v89
    %v132 = vunpack.c.h.b16 %v89
    %v133 = vunpack.c.l.b16 %v90
    %v134 = vunpack.c.h.b16 %v90
    %v135 = vunpack.c.l.b16 %v91
    %v136 = vunpack.c.h.b16 %v91
    %v137 = vunpack.c.l.b16 %v92
    %v138 = vunpack.c.h.b16 %v92
    %v139 = vunpack.c.l.b16 %v93
    %v140 = vunpack.c.h.b16 %v93
    %v141 = vunpack.c.l.b16 %v94
    %v142 = vunpack.c.h.b16 %v94
    %v143 = vunpack.c.l.b16 %v95
    %v144 = vunpack.c.h.b16 %v95
    %v145 = vunpack.c.l.b16 %v96
    %v146 = vunpack.c.h.b16 %v96
    %v147 = vunpack.c.l.b16 %v97
    %v148 = vunpack.c.h.b16 %v97
    %v149 = vunpack.c.l.b16 %v98
    %v150 = vunpack.c.h.b16 %v98
    %v151 = vunpack.c.l.b16 %v99
    %v152 = vunpack.c.h.b16 %v99
    %v153 = vunpack.c.l.b16 %v100
    %v154 = vunpack.c.h.b16 %v100
    %v155 = vpack.c.b16 %v125, %v123
    %v156 = vpack.c.b16 %v126, %v124
    %v157 = vpack.c.b16 %v129, %v127
    %v158 = vpack.c.b16 %v130, %v128
    %v159 = vpack.c.b16 %v133, %v131
    %v160 = vpack.c.b16 %v134, %v132
    %v161 = vpack.c.b16 %v137, %v135
    %v162 = vpack.c.b16 %v138, %v136
    %v163 = vpack.c.b16 %v141, %v139
    %v164 = vpack.c.b16 %v142, %v140
    %v165 = vpack.c.b16 %v145, %v143
    %v166 = vpack.c.b16 %v146, %v144
    %v167 = vpack.c.b16 %v149, %v147
    %v168 = vpack.c.b16 %v150, %v148
    %v169 = vpack.c.b16 %v153, %v151
    %v170 = vpack.c.b16 %v154, %v152
    %187 = vmatpush.bf16.msra.mxu0 %v169
    %188 = vmatpush.bf16.msra.mxu0 %v167
    %189 = vmatpush.bf16.msra.mxu0 %v165
    %190 = vmatpush.bf16.msra.mxu0 %v163
    %191 = vmatpush.bf16.msra.mxu0 %v161
    %192 = vmatpush.bf16.msra.mxu0 %v159
    %193 = vmatpush.bf16.msra.mxu0 %v157
    %194 = vmatpush.bf16.msra.mxu0 %v155
    %195 = vmatmul.bf16.gmra.mxu0 %v84
    %v196 = vpop.f32.mrf.mxu0
    %v197 = vadd.f32 %v103, %v196
    %v198 = vpop.f32.mrf.mxu0
    %v199 = vadd.f32 %v103, %v198
    %200 = vdwg.mxu0
    %201 = vmatpush.bf16.msra.mxu0 %v170
    %202 = vmatpush.bf16.msra.mxu0 %v168
    %203 = vmatpush.bf16.msra.mxu0 %v166
    %204 = vmatpush.bf16.msra.mxu0 %v164
    %205 = vmatpush.bf16.msra.mxu0 %v162
    %206 = vmatpush.bf16.msra.mxu0 %v160
    %207 = vmatpush.bf16.msra.mxu0 %v158
    %208 = vmatpush.bf16.msra.mxu0 %v156
    %209 = vmatmul.bf16.gmra.mxu0 %v84
    %v210 = vpop.f32.mrf.mxu0
    %v211 = vadd.f32 %v104, %v210
    %v212 = vpop.f32.mrf.mxu0
    %v213 = vadd.f32 %v104, %v212
    %214 = vdwg.mxu0
    %v215 = vpack.c.bf16 %v211, %v197
    %v216 = vpack.c.bf16 %v213, %v199
    %v217 = vunpack.c.l.bf16 %v215
    %v218 = vunpack.c.h.bf16 %v215
    %v219 = vunpack.c.l.bf16 %v216
    %v220 = vunpack.c.h.bf16 %v216
    %v221 = vmul.f32 %v217, %v217
    %v222 = vmul.f32 %v218, %v218
    %v223 = vmul.f32 %v219, %v219
    %v224 = vmul.f32 %v220, %v220
    %v225 = vpack.c.bf16 %v222, %v221
    %v226 = vpack.c.bf16 %v224, %v223
    %v227 = vunpack.c.l.bf16 %v225
    %v228 = vunpack.c.h.bf16 %v225
    %v229 = vunpack.c.l.bf16 %v226
    %v230 = vunpack.c.h.bf16 %v226
    %v231 = vmul.f32 %v217, %v227
    %v232 = vmul.f32 %v218, %v228
    %v233 = vmul.f32 %v219, %v229
    %v234 = vmul.f32 %v220, %v230
    %v235 = vpack.c.bf16 %v232, %v231
    %v236 = vpack.c.bf16 %v234, %v233
    %v237 = vunpack.c.l.bf16 %v235
    %v238 = vunpack.c.h.bf16 %v235
    %v239 = vunpack.c.l.bf16 %v236
    %v240 = vunpack.c.h.bf16 %v236
    %v241 = vmul.f32 %v237, 0.044677734
    %v242 = vmul.f32 %v238, 0.044677734
    %v243 = vmul.f32 %v239, 0.044677734
    %v244 = vmul.f32 %v240, 0.044677734
    %v245 = vpack.c.bf16 %v242, %v241
    %v246 = vpack.c.bf16 %v244, %v243
    %v247 = vunpack.c.l.bf16 %v245
    %v248 = vunpack.c.h.bf16 %v245
    %v249 = vunpack.c.l.bf16 %v246
    %v250 = vunpack.c.h.bf16 %v246
    %v251 = vadd.f32 %v217, %v247
    %v252 = vadd.f32 %v218, %v248
    %v253 = vadd.f32 %v219, %v249
    %v254 = vadd.f32 %v220, %v250
    %v255 = vpack.c.bf16 %v252, %v251
    %v256 = vpack.c.bf16 %v254, %v253
    %v257 = vunpack.c.l.bf16 %v255
    %v258 = vunpack.c.h.bf16 %v255
    %v259 = vunpack.c.l.bf16 %v256
    %v260 = vunpack.c.h.bf16 %v256
    %v261 = vmul.f32 %v257, 0.796875
    %v262 = vmul.f32 %v258, 0.796875
    %v263 = vmul.f32 %v259, 0.796875
    %v264 = vmul.f32 %v260, 0.796875
    %v265 = vpack.c.bf16 %v262, %v261
    %v266 = vpack.c.bf16 %v264, %v263
    %v267 = vunpack.c.l.bf16 %v265
    %v268 = vunpack.c.h.bf16 %v265
    %v269 = vunpack.c.l.bf16 %v266
    %v270 = vunpack.c.h.bf16 %v266
    %v271 = vtanh.pop %v267
    %v272 = vtanh.pop %v268
    %v273 = vtanh.pop %v269
    %v274 = vtanh.pop %v270
    %v275 = vpack.c.bf16 %v272, %v271
    %v276 = vpack.c.bf16 %v274, %v273
    %v277 = vunpack.c.l.bf16 %v275
    %v278 = vunpack.c.h.bf16 %v275
    %v279 = vunpack.c.l.bf16 %v276
    %v280 = vunpack.c.h.bf16 %v276
    %v281 = vadd.f32 %v277, 1.0
    %v282 = vadd.f32 %v278, 1.0
    %v283 = vadd.f32 %v279, 1.0
    %v284 = vadd.f32 %v280, 1.0
    %v285 = vpack.c.bf16 %v282, %v281
    %v286 = vpack.c.bf16 %v284, %v283
    %v287 = vunpack.c.l.bf16 %v285
    %v288 = vunpack.c.h.bf16 %v285
    %v289 = vunpack.c.l.bf16 %v286
    %v290 = vunpack.c.h.bf16 %v286
    %v291 = vmul.f32 %v287, 0.5
    %v292 = vmul.f32 %v288, 0.5
    %v293 = vmul.f32 %v289, 0.5
    %v294 = vmul.f32 %v290, 0.5
    %v295 = vpack.c.bf16 %v292, %v291
    %v296 = vpack.c.bf16 %v294, %v293
    %v297 = vunpack.c.l.bf16 %v295
    %v298 = vunpack.c.h.bf16 %v295
    %v299 = vunpack.c.l.bf16 %v296
    %v300 = vunpack.c.h.bf16 %v296
    %v301 = vmul.f32 %v217, %v297
    %v302 = vmul.f32 %v218, %v298
    %v303 = vmul.f32 %v219, %v299
    %v304 = vmul.f32 %v220, %v300
    %v305 = vpack.c.bf16 %v303, %v301
    %v306 = vpack.c.bf16 %v304, %v302
    %v307 = vld [vmem:[#allocation8] sm:$0xf]
    %v308 = vld [vmem:[#allocation8 + $0x4] sm:$0xf]
    %v309 = vld [vmem:[#allocation8 + $0x8] sm:$0xf]
    %v310 = vld [vmem:[#allocation8 + $0xc] sm:$0xf]
    %v311 = vld [vmem:[#allocation8 + $0x10] sm:$0xf]
    %v312 = vld [vmem:[#allocation8 + $0x14] sm:$0xf]
    %v313 = vld [vmem:[#allocation8 + $0x18] sm:$0xf]
    %v314 = vld [vmem:[#allocation8 + $0x1c] sm:$0xf]
    %v315 = vld [vmem:[#allocation8 + $0x20] sm:$0xf]
    %v316 = vld [vmem:[#allocation8 + $0x24] sm:$0xf]
    %v317 = vld [vmem:[#allocation8 + $0x28] sm:$0xf]
    %v318 = vld [vmem:[#allocation8 + $0x2c] sm:$0xf]
    %v319 = vld [vmem:[#allocation8 + $0x30] sm:$0xf]
    %v320 = vld [vmem:[#allocation8 + $0x34] sm:$0xf]
    %v321 = vld [vmem:[#allocation8 + $0x38] sm:$0xf]
    %v322 = vld [vmem:[#allocation8 + $0x3c] sm:$0xf]
    %v323 = vld [vmem:[#allocation8 + $0x40] sm:$0xf]
    %v324 = vld [vmem:[#allocation8 + $0x44] sm:$0xf]
    %v325 = vld [vmem:[#allocation8 + $0x48] sm:$0xf]
    %v326 = vld [vmem:[#allocation8 + $0x4c] sm:$0xf]
    %v327 = vld [vmem:[#allocation8 + $0x50] sm:$0xf]
    %v328 = vld [vmem:[#allocation8 + $0x54] sm:$0xf]
    %v329 = vld [vmem:[#allocation8 + $0x58] sm:$0xf]
    %v330 = vld [vmem:[#allocation8 + $0x5c] sm:$0xf]
    %v331 = vld [vmem:[#allocation8 + $0x60] sm:$0xf]
    %v332 = vld [vmem:[#allocation8 + $0x64] sm:$0xf]
    %v333 = vld [vmem:[#allocation8 + $0x68] sm:$0xf]
    %v334 = vld [vmem:[#allocation8 + $0x6c] sm:$0xf]
    %v335 = vld [vmem:[#allocation8 + $0x70] sm:$0xf]
    %v336 = vld [vmem:[#allocation8 + $0x74] sm:$0xf]
    %v337 = vld [vmem:[#allocation8 + $0x78] sm:$0xf]
    %v338 = vld [vmem:[#allocation8 + $0x7c] sm:$0xf]
    %v339 = vld [vmem:[%s4] sm:$0x1]
    %v341 = vperm.slane %v339, 0
    %v375 = vunpack.c.l.b16 %v307
    %v376 = vunpack.c.l.b16 %v308
    %v377 = vunpack.c.l.b16 %v309
    %v378 = vunpack.c.l.b16 %v310
    %v379 = vunpack.c.l.b16 %v311
    %v380 = vunpack.c.l.b16 %v312
    %v381 = vunpack.c.l.b16 %v313
    %v382 = vunpack.c.l.b16 %v314
    %v383 = vunpack.c.l.b16 %v315
    %v384 = vunpack.c.l.b16 %v316
    %v385 = vunpack.c.l.b16 %v317
    %v386 = vunpack.c.l.b16 %v318
    %v387 = vunpack.c.l.b16 %v319
    %v388 = vunpack.c.l.b16 %v320
    %v389 = vunpack.c.l.b16 %v321
    %v390 = vunpack.c.l.b16 %v322
    %v391 = vunpack.c.l.b16 %v323
    %v392 = vunpack.c.l.b16 %v324
    %v393 = vunpack.c.l.b16 %v325
    %v394 = vunpack.c.l.b16 %v326
    %v395 = vunpack.c.l.b16 %v327
    %v396 = vunpack.c.l.b16 %v328
    %v397 = vunpack.c.l.b16 %v329
    %v398 = vunpack.c.l.b16 %v330
    %v399 = vunpack.c.l.b16 %v331
    %v400 = vunpack.c.l.b16 %v332
    %v401 = vunpack.c.l.b16 %v333
    %v402 = vunpack.c.l.b16 %v334
    %v403 = vunpack.c.l.b16 %v335
    %v404 = vunpack.c.l.b16 %v336
    %v405 = vunpack.c.l.b16 %v337
    %v406 = vunpack.c.l.b16 %v338
    %v407 = vpack.c.b16 %v376, %v375
    %v408 = vpack.c.b16 %v378, %v377
    %v409 = vpack.c.b16 %v380, %v379
    %v410 = vpack.c.b16 %v382, %v381
    %v411 = vpack.c.b16 %v384, %v383
    %v412 = vpack.c.b16 %v386, %v385
    %v413 = vpack.c.b16 %v388, %v387
    %v414 = vpack.c.b16 %v390, %v389
    %v415 = vpack.c.b16 %v392, %v391
    %v416 = vpack.c.b16 %v394, %v393
    %v417 = vpack.c.b16 %v396, %v395
    %v418 = vpack.c.b16 %v398, %v397
    %v419 = vpack.c.b16 %v400, %v399
    %v420 = vpack.c.b16 %v402, %v401
    %v421 = vpack.c.b16 %v404, %v403
    %v422 = vpack.c.b16 %v406, %v405
    %439 = vmatpush.bf16.msra.mxu0 %v414
    %440 = vmatpush.bf16.msra.mxu0 %v413
    %441 = vmatpush.bf16.msra.mxu0 %v412
    %442 = vmatpush.bf16.msra.mxu0 %v411
    %443 = vmatpush.bf16.msra.mxu0 %v410
    %444 = vmatpush.bf16.msra.mxu0 %v409
    %445 = vmatpush.bf16.msra.mxu0 %v408
    %446 = vmatpush.bf16.msra.mxu0 %v407
    %447 = vmatmul.bf16.gmra.mxu0 %v305
    %v448 = vpop.f32.mrf.mxu0
    %v449 = vadd.f32 %v341, %v448
    %v450 = vpop.f32.mrf.mxu0
    %v451 = vadd.f32 %v341, %v450
    %452 = vdwg.mxu0
    %453 = vmatpush.bf16.msra.mxu0 %v422
    %454 = vmatpush.bf16.msra.mxu0 %v421
    %455 = vmatpush.bf16.msra.mxu0 %v420
    %456 = vmatpush.bf16.msra.mxu0 %v419
    %457 = vmatpush.bf16.msra.mxu0 %v418
    %458 = vmatpush.bf16.msra.mxu0 %v417
    %459 = vmatpush.bf16.msra.mxu0 %v416
    %460 = vmatpush.bf16.msra.mxu0 %v415
    %461 = vmatmul.bf16.gmra.mxu0 %v306
    %v462 = vpop.f32.mrf.mxu0
    %v463 = vadd.f32 %v449, %v462
    %v464 = vpop.f32.mrf.mxu0
    %v465 = vadd.f32 %v451, %v464
    %466 = vdwg.mxu0
    %v467 = vadd.f32 %v463, %v82
    %v468 = vadd.f32 %v465, %v83
    %469 = vst [vmem:[#allocation10] sm:$0xff] %v467
    %470 = vst [vmem:[#allocation10 + $0x8] sm:$0xff] %v468
    // Predicated region
    $region38: #{tpu_custom_call.1} parent=1 // pred_check
      _
    $region39: #{tpu_custom_call.1} parent=1 // pred_check_branch
      %472 = sbr.rel (0) target = $region41
    $region40: #{tpu_custom_call.1} parent=1 // pred_region
      %474 = vsyncadd [#allocation4], 0
      %s475 = sshll.u32 [#allocation10], 4
      %s476 = int_to_ptr.vmem [resolvable:$true] %s475
      %s477 = sshll.u32 %s5, 4
      %s478 = int_to_ptr.hbm [resolvable:$true] %s477
      %483 = dma.vmem_to_hbm [thread:$0]  %s476, 256, %s478, [#allocation4], 128, 128, 8
    $region41: #{tpu_custom_call.1} parent=1 // pred_fallthru
      _
    // Predicated region
    $region42: #{tpu_custom_call.1} parent=1 // pred_check
      _
    $region43: #{tpu_custom_call.1} parent=1 // pred_check_branch
      %485 = sbr.rel (0) target = $region45
    $region44: #{tpu_custom_call.1} parent=1 // pred_region
      %487 = dma.done [#allocation4], 256
    $region45: #{tpu_custom_call.1} parent=1 // pred_fallthru
      _
    %488 = vsyncpa [#allocation3], 1
    %489 = vsyncpa [#allocation6], 1
    %490 = vsyncpa [#allocation9], 1
    %491 = vsyncpa [#allocation4], 1

// kernel: tpu_custom_call.1
$region0: #{tpu_custom_call.1}
  #allocation0 [shape = 'u32[]', space=smem, size = 0x4, offset = 0x4, fixed_abs, tag = 'smem constant byte address 0x4 - core index']
  #allocation1 [shape = 'u32[72,128]{1,0:T(1,128)}', space=vmem, size = 0x9000, scoped, tag = 'internal scratch']
  %s0 = inlined_call_operand.hbm [shape: f32[16,128], index: 0, kind: input, shape index: {}]
  %s1 = inlined_call_operand.hbm [shape: bf16[128,256], index: 1, kind: input, shape index: {}]
  %s2 = inlined_call_operand.hbm [shape: f32[1,256], index: 2, kind: input, shape index: {}]
  %s3 = inlined_call_operand.hbm [shape: bf16[256,128], index: 3, kind: input, shape index: {}]
  %s4 = inlined_call_operand.vmem [shape: f32[1,128], index: 4, kind: input, shape index: {}]
  %s5 = inlined_call_operand.hbm [shape: f32[16,128], index: 5, kind: output, shape index: {}]
  %s6 = sld [smem:[#allocation0]]
  $region46: #{tpu_custom_call.1} parent=0
    _
  %s8 = ssub.s32 1, %s6
  %s9 = scalar_select 0, %s8, %s6
  $region1: #{tpu_custom_call.1} parent=0
    #allocation2 [shape = 'u8[8192]{0}', space=vmem, size = 0x2000, scoped, tag = 'input window, operand 0, single buffered']
    #allocation3 [shape = 's32[1]{0}', space=sflag, size = 0x4, scoped, tag = 'scoped memory for tpu_custom_call.1']
    #allocation4 [shape = 's32[1]{0}', space=sflag, size = 0x4, scoped, tag = 'scoped memory for tpu_custom_call.1']
    #allocation5 [shape = 'u8[65536]{0}', space=vmem, size = 0x10000, scoped, tag = 'input window, operand 1, single buffered']
    #allocation6 [shape = 's32[1]{0}', space=sflag, size = 0x4, scoped, tag = 'scoped memory for tpu_custom_call.1']
    #allocation7 [shape = 'u8[1024]{0}', space=vmem, size = 0x400, scoped, tag = 'input window, operand 2, single buffered']
    #allocation8 [shape = 'u8[65536]{0}', space=vmem, size = 0x10000, scoped, tag = 'input window, operand 3, single buffered']
    #allocation9 [shape = 's32[1]{0}', space=sflag, size = 0x4, scoped, tag = 'scoped memory for tpu_custom_call.1']
    #allocation10 [shape = 'u8[8192]{0}', space=vmem, size = 0x2000, scoped, tag = 'output window, operand 0, single buffered']
    %10 = vsyncpa [#allocation3], 0
    %11 = vsyncpa [#allocation6], 0
    %12 = vsyncpa [#allocation9], 0
    %13 = vsyncpa [#allocation4], 0
    // Predicated region
    $region2: #{tpu_custom_call.1} parent=1 // pred_check
      _
    $region3: #{tpu_custom_call.1} parent=1 // pred_check_branch
      %15 = sbr.rel (0) target = $region5
    $region4: #{tpu_custom_call.1} parent=1 // pred_region
      %17 = vsyncadd [#allocation3], 0
      %s18 = sshll.u32 %s0, 4
      %s19 = int_to_ptr.hbm [resolvable:$true] %s18
      %s20 = sshll.u32 [#allocation2], 4
      %s21 = int_to_ptr.vmem [resolvable:$true] %s20
      %26 = dma.hbm_to_vmem [thread:$0]  %s19, 256, %s21, [#allocation3], 128, 128, 8
    $region5: #{tpu_custom_call.1} parent=1 // pred_fallthru
      _
    // Predicated region
    $region6: #{tpu_custom_call.1} parent=1 // pred_check
      _
    $region7: #{tpu_custom_call.1} parent=1 // pred_check_branch
      %28 = sbr.rel (0) target = $region9
    $region8: #{tpu_custom_call.1} parent=1 // pred_region
      %30 = vsyncadd [#allocation6], 0
      %s31 = sshll.u32 %s1, 4
      %s32 = int_to_ptr.hbm [resolvable:$true] %s31
      %s33 = sshll.u32 [#allocation5], 4
      %s34 = int_to_ptr.vmem [resolvable:$true] %s33
      %39 = dma.hbm_to_vmem [thread:$0]  %s32, 2048, %s34, [#allocation6], 128, 128, 8
    $region9: #{tpu_custom_call.1} parent=1 // pred_fallthru
      _
    // Predicated region
    $region10: #{tpu_custom_call.1} parent=1 // pred_check
      _
    $region11: #{tpu_custom_call.1} parent=1 // pred_check_branch
      %41 = sbr.rel (0) target = $region13
    $region12: #{tpu_custom_call.1} parent=1 // pred_region
      %43 = vsyncadd [#allocation6], 0
      %s45 = sshll.u32 %s2, 4
      %s46 = int_to_ptr.hbm [resolvable:$true] %s45
      %s47 = sshll.u32 [#allocation7], 4
      %s48 = int_to_ptr.vmem [resolvable:$true] %s47
      %50 = dma.hbm_to_vmem [thread:$0]  %s46, 32, %s48, [#allocation6]
    $region13: #{tpu_custom_call.1} parent=1 // pred_fallthru
      _
    // Predicated region
    $region14: #{tpu_custom_call.1} parent=1 // pred_check
      _
    $region15: #{tpu_custom_call.1} parent=1 // pred_check_branch
      %52 = sbr.rel (0) target = $region17
    $region16: #{tpu_custom_call.1} parent=1 // pred_region
      %54 = vsyncadd [#allocation9], 0
      %s55 = sshll.u32 %s3, 4
      %s56 = int_to_ptr.hbm [resolvable:$true] %s55
      %s57 = sshll.u32 [#allocation8], 4
      %s58 = int_to_ptr.vmem [resolvable:$true] %s57
      %63 = dma.hbm_to_vmem [thread:$0]  %s56, 2048, %s58, [#allocation9], 64, 64, 4
    $region17: #{tpu_custom_call.1} parent=1 // pred_fallthru
      _
    // Predicated region
    $region18: #{tpu_custom_call.1} parent=1 // pred_check
      _
    $region19: #{tpu_custom_call.1} parent=1 // pred_check_branch
      %65 = sbr.rel (0) target = $region21
    $region20: #{tpu_custom_call.1} parent=1 // pred_region
      _
    $region21: #{tpu_custom_call.1} parent=1 // pred_fallthru
      _
    // Predicated region
    $region22: #{tpu_custom_call.1} parent=1 // pred_check
      _
    $region23: #{tpu_custom_call.1} parent=1 // pred_check_branch
      %67 = sbr.rel (0) target = $region25
    $region24: #{tpu_custom_call.1} parent=1 // pred_region
      %69 = dma.done [#allocation3], 256
    $region25: #{tpu_custom_call.1} parent=1 // pred_fallthru
      _
    // Predicated region
    $region26: #{tpu_custom_call.1} parent=1 // pred_check
      _
    $region27: #{tpu_custom_call.1} parent=1 // pred_check_branch
      %71 = sbr.rel (0) target = $region29
    $region28: #{tpu_custom_call.1} parent=1 // pred_region
      %73 = dma.done [#allocation6], 2048
    $region29: #{tpu_custom_call.1} parent=1 // pred_fallthru
      _
    // Predicated region
    $region30: #{tpu_custom_call.1} parent=1 // pred_check
      _
    $region31: #{tpu_custom_call.1} parent=1 // pred_check_branch
      %75 = sbr.rel (0) target = $region33
    $region32: #{tpu_custom_call.1} parent=1 // pred_region
      %77 = dma.done [#allocation6], 32
    $region33: #{tpu_custom_call.1} parent=1 // pred_fallthru
      _
    // Predicated region
    $region34: #{tpu_custom_call.1} parent=1 // pred_check
      _
    $region35: #{tpu_custom_call.1} parent=1 // pred_check_branch
      %79 = sbr.rel (0) target = $region37
    $region36: #{tpu_custom_call.1} parent=1 // pred_region
      %81 = dma.done [#allocation9], 2048
    $region37: #{tpu_custom_call.1} parent=1 // pred_fallthru
      _
    %v82 = vld [vmem:[#allocation2] sm:$0xff]
    %v83 = vld [vmem:[#allocation2 + $0x8] sm:$0xff]
    %v84 = vpack.c.bf16 %v83, %v82
    %v85 = vld [vmem:[#allocation5] sm:$0xff]
    %v86 = vld [vmem:[#allocation5 + $0x8] sm:$0xff]
    %v87 = vld [vmem:[#allocation5 + $0x10] sm:$0xff]
    %v88 = vld [vmem:[#allocation5 + $0x18] sm:$0xff]
    %v89 = vld [vmem:[#allocation5 + $0x20] sm:$0xff]
    %v90 = vld [vmem:[#allocation5 + $0x28] sm:$0xff]
    %v91 = vld [vmem:[#allocation5 + $0x30] sm:$0xff]
    %v92 = vld [vmem:[#allocation5 + $0x38] sm:$0xff]
    %v93 = vld [vmem:[#allocation5 + $0x40] sm:$0xff]
    %v94 = vld [vmem:[#allocation5 + $0x48] sm:$0xff]
    %v95 = vld [vmem:[#allocation5 + $0x50] sm:$0xff]
    %v96 = vld [vmem:[#allocation5 + $0x58] sm:$0xff]
    %v97 = vld [vmem:[#allocation5 + $0x60] sm:$0xff]
    %v98 = vld [vmem:[#allocation5 + $0x68] sm:$0xff]
    %v99 = vld [vmem:[#allocation5 + $0x70] sm:$0xff]
    %v100 = vld [vmem:[#allocation5 + $0x78] sm:$0xff]
    %v101 = vld [vmem:[#allocation7] sm:$0x3]
    %v103 = vperm.slane %v101, 0
    %v104 = vperm.slane %v101, 1
    %v123 = vunpack.c.l.b16 %v85
    %v124 = vunpack.c.h.b16 %v85
    %v125 = vunpack.c.l.b16 %v86
    %v126 = vunpack.c.h.b16 %v86
    %v127 = vunpack.c.l.b16 %v87
    %v128 = vunpack.c.h.b16 %v87
    %v129 = vunpack.c.l.b16 %v88
    %v130 = vunpack.c.h.b16 %v88
    %v131 = vunpack.c.l.b16 %v89
    %v132 = vunpack.c.h.b16 %v89
    %v133 = vunpack.c.l.b16 %v90
    %v134 = vunpack.c.h.b16 %v90
    %v135 = vunpack.c.l.b16 %v91
    %v136 = vunpack.c.h.b16 %v91
    %v137 = vunpack.c.l.b16 %v92
    %v138 = vunpack.c.h.b16 %v92
    %v139 = vunpack.c.l.b16 %v93
    %v140 = vunpack.c.h.b16 %v93
    %v141 = vunpack.c.l.b16 %v94
    %v142 = vunpack.c.h.b16 %v94
    %v143 = vunpack.c.l.b16 %v95
    %v144 = vunpack.c.h.b16 %v95
    %v145 = vunpack.c.l.b16 %v96
    %v146 = vunpack.c.h.b16 %v96
    %v147 = vunpack.c.l.b16 %v97
    %v148 = vunpack.c.h.b16 %v97
    %v149 = vunpack.c.l.b16 %v98
    %v150 = vunpack.c.h.b16 %v98
    %v151 = vunpack.c.l.b16 %v99
    %v152 = vunpack.c.h.b16 %v99
    %v153 = vunpack.c.l.b16 %v100
    %v154 = vunpack.c.h.b16 %v100
    %v155 = vpack.c.b16 %v125, %v123
    %v156 = vpack.c.b16 %v126, %v124
    %v157 = vpack.c.b16 %v129, %v127
    %v158 = vpack.c.b16 %v130, %v128
    %v159 = vpack.c.b16 %v133, %v131
    %v160 = vpack.c.b16 %v134, %v132
    %v161 = vpack.c.b16 %v137, %v135
    %v162 = vpack.c.b16 %v138, %v136
    %v163 = vpack.c.b16 %v141, %v139
    %v164 = vpack.c.b16 %v142, %v140
    %v165 = vpack.c.b16 %v145, %v143
    %v166 = vpack.c.b16 %v146, %v144
    %v167 = vpack.c.b16 %v149, %v147
    %v168 = vpack.c.b16 %v150, %v148
    %v169 = vpack.c.b16 %v153, %v151
    %v170 = vpack.c.b16 %v154, %v152
    %187 = vmatpush.bf16.msra.mxu0 %v169
    %188 = vmatpush.bf16.msra.mxu0 %v167
    %189 = vmatpush.bf16.msra.mxu0 %v165
    %190 = vmatpush.bf16.msra.mxu0 %v163
    %191 = vmatpush.bf16.msra.mxu0 %v161
    %192 = vmatpush.bf16.msra.mxu0 %v159
    %193 = vmatpush.bf16.msra.mxu0 %v157
    %194 = vmatpush.bf16.msra.mxu0 %v155
    %195 = vmatmul.bf16.gmra.mxu0 %v84
    %v196 = vpop.f32.mrf.mxu0
    %v197 = vadd.f32 %v103, %v196
    %v198 = vpop.f32.mrf.mxu0
    %v199 = vadd.f32 %v103, %v198
    %200 = vdwg.mxu0
    %201 = vmatpush.bf16.msra.mxu0 %v170
    %202 = vmatpush.bf16.msra.mxu0 %v168
    %203 = vmatpush.bf16.msra.mxu0 %v166
    %204 = vmatpush.bf16.msra.mxu0 %v164
    %205 = vmatpush.bf16.msra.mxu0 %v162
    %206 = vmatpush.bf16.msra.mxu0 %v160
    %207 = vmatpush.bf16.msra.mxu0 %v158
    %208 = vmatpush.bf16.msra.mxu0 %v156
    %209 = vmatmul.bf16.gmra.mxu0 %v84
    %v210 = vpop.f32.mrf.mxu0
    %v211 = vadd.f32 %v104, %v210
    %v212 = vpop.f32.mrf.mxu0
    %v213 = vadd.f32 %v104, %v212
    %214 = vdwg.mxu0
    %v215 = vpack.c.bf16 %v211, %v197
    %v216 = vpack.c.bf16 %v213, %v199
    %v217 = vunpack.c.l.bf16 %v215
    %v218 = vunpack.c.h.bf16 %v215
    %v219 = vunpack.c.l.bf16 %v216
    %v220 = vunpack.c.h.bf16 %v216
    %v221 = vmul.f32 %v217, %v217
    %v222 = vmul.f32 %v218, %v218
    %v223 = vmul.f32 %v219, %v219
    %v224 = vmul.f32 %v220, %v220
    %v225 = vpack.c.bf16 %v222, %v221
    %v226 = vpack.c.bf16 %v224, %v223
    %v227 = vunpack.c.l.bf16 %v225
    %v228 = vunpack.c.h.bf16 %v225
    %v229 = vunpack.c.l.bf16 %v226
    %v230 = vunpack.c.h.bf16 %v226
    %v231 = vmul.f32 %v217, %v227
    %v232 = vmul.f32 %v218, %v228
    %v233 = vmul.f32 %v219, %v229
    %v234 = vmul.f32 %v220, %v230
    %v235 = vpack.c.bf16 %v232, %v231
    %v236 = vpack.c.bf16 %v234, %v233
    %v237 = vunpack.c.l.bf16 %v235
    %v238 = vunpack.c.h.bf16 %v235
    %v239 = vunpack.c.l.bf16 %v236
    %v240 = vunpack.c.h.bf16 %v236
    %v241 = vmul.f32 %v237, 0.044677734
    %v242 = vmul.f32 %v238, 0.044677734
    %v243 = vmul.f32 %v239, 0.044677734
    %v244 = vmul.f32 %v240, 0.044677734
    %v245 = vpack.c.bf16 %v242, %v241
    %v246 = vpack.c.bf16 %v244, %v243
    %v247 = vunpack.c.l.bf16 %v245
    %v248 = vunpack.c.h.bf16 %v245
    %v249 = vunpack.c.l.bf16 %v246
    %v250 = vunpack.c.h.bf16 %v246
    %v251 = vadd.f32 %v217, %v247
    %v252 = vadd.f32 %v218, %v248
    %v253 = vadd.f32 %v219, %v249
    %v254 = vadd.f32 %v220, %v250
    %v255 = vpack.c.bf16 %v252, %v251
    %v256 = vpack.c.bf16 %v254, %v253
    %v257 = vunpack.c.l.bf16 %v255
    %v258 = vunpack.c.h.bf16 %v255
    %v259 = vunpack.c.l.bf16 %v256
    %v260 = vunpack.c.h.bf16 %v256
    %v261 = vmul.f32 %v257, 0.796875
    %v262 = vmul.f32 %v258, 0.796875
    %v263 = vmul.f32 %v259, 0.796875
    %v264 = vmul.f32 %v260, 0.796875
    %v265 = vpack.c.bf16 %v262, %v261
    %v266 = vpack.c.bf16 %v264, %v263
    %v267 = vunpack.c.l.bf16 %v265
    %v268 = vunpack.c.h.bf16 %v265
    %v269 = vunpack.c.l.bf16 %v266
    %v270 = vunpack.c.h.bf16 %v266
    %v271 = vtanh.pop %v267
    %v272 = vtanh.pop %v268
    %v273 = vtanh.pop %v269
    %v274 = vtanh.pop %v270
    %v275 = vpack.c.bf16 %v272, %v271
    %v276 = vpack.c.bf16 %v274, %v273
    %v277 = vunpack.c.l.bf16 %v275
    %v278 = vunpack.c.h.bf16 %v275
    %v279 = vunpack.c.l.bf16 %v276
    %v280 = vunpack.c.h.bf16 %v276
    %v281 = vadd.f32 %v277, 1.0
    %v282 = vadd.f32 %v278, 1.0
    %v283 = vadd.f32 %v279, 1.0
    %v284 = vadd.f32 %v280, 1.0
    %v285 = vpack.c.bf16 %v282, %v281
    %v286 = vpack.c.bf16 %v284, %v283
    %v287 = vunpack.c.l.bf16 %v285
    %v288 = vunpack.c.h.bf16 %v285
    %v289 = vunpack.c.l.bf16 %v286
    %v290 = vunpack.c.h.bf16 %v286
    %v291 = vmul.f32 %v287, 0.5
    %v292 = vmul.f32 %v288, 0.5
    %v293 = vmul.f32 %v289, 0.5
    %v294 = vmul.f32 %v290, 0.5
    %v295 = vpack.c.bf16 %v292, %v291
    %v296 = vpack.c.bf16 %v294, %v293
    %v297 = vunpack.c.l.bf16 %v295
    %v298 = vunpack.c.h.bf16 %v295
    %v299 = vunpack.c.l.bf16 %v296
    %v300 = vunpack.c.h.bf16 %v296
    %v301 = vmul.f32 %v217, %v297
    %v302 = vmul.f32 %v218, %v298
    %v303 = vmul.f32 %v219, %v299
    %v304 = vmul.f32 %v220, %v300
    %v305 = vpack.c.bf16 %v303, %v301
    %v306 = vpack.c.bf16 %v304, %v302
    %v307 = vld [vmem:[#allocation8] sm:$0xf]
    %v308 = vld [vmem:[#allocation8 + $0x4] sm:$0xf]
    %v309 = vld [vmem:[#allocation8 + $0x8] sm:$0xf]
    %v310 = vld [vmem:[#allocation8 + $0xc] sm:$0xf]
    %v311 = vld [vmem:[#allocation8 + $0x10] sm:$0xf]
    %v312 = vld [vmem:[#allocation8 + $0x14] sm:$0xf]
    %v313 = vld [vmem:[#allocation8 + $0x18] sm:$0xf]
    %v314 = vld [vmem:[#allocation8 + $0x1c] sm:$0xf]
    %v315 = vld [vmem:[#allocation8 + $0x20] sm:$0xf]
    %v316 = vld [vmem:[#allocation8 + $0x24] sm:$0xf]
    %v317 = vld [vmem:[#allocation8 + $0x28] sm:$0xf]
    %v318 = vld [vmem:[#allocation8 + $0x2c] sm:$0xf]
    %v319 = vld [vmem:[#allocation8 + $0x30] sm:$0xf]
    %v320 = vld [vmem:[#allocation8 + $0x34] sm:$0xf]
    %v321 = vld [vmem:[#allocation8 + $0x38] sm:$0xf]
    %v322 = vld [vmem:[#allocation8 + $0x3c] sm:$0xf]
    %v323 = vld [vmem:[#allocation8 + $0x40] sm:$0xf]
    %v324 = vld [vmem:[#allocation8 + $0x44] sm:$0xf]
    %v325 = vld [vmem:[#allocation8 + $0x48] sm:$0xf]
    %v326 = vld [vmem:[#allocation8 + $0x4c] sm:$0xf]
    %v327 = vld [vmem:[#allocation8 + $0x50] sm:$0xf]
    %v328 = vld [vmem:[#allocation8 + $0x54] sm:$0xf]
    %v329 = vld [vmem:[#allocation8 + $0x58] sm:$0xf]
    %v330 = vld [vmem:[#allocation8 + $0x5c] sm:$0xf]
    %v331 = vld [vmem:[#allocation8 + $0x60] sm:$0xf]
    %v332 = vld [vmem:[#allocation8 + $0x64] sm:$0xf]
    %v333 = vld [vmem:[#allocation8 + $0x68] sm:$0xf]
    %v334 = vld [vmem:[#allocation8 + $0x6c] sm:$0xf]
    %v335 = vld [vmem:[#allocation8 + $0x70] sm:$0xf]
    %v336 = vld [vmem:[#allocation8 + $0x74] sm:$0xf]
    %v337 = vld [vmem:[#allocation8 + $0x78] sm:$0xf]
    %v338 = vld [vmem:[#allocation8 + $0x7c] sm:$0xf]
    %v339 = vld [vmem:[%s4] sm:$0x1]
    %v341 = vperm.slane %v339, 0
    %v375 = vunpack.c.l.b16 %v307
    %v376 = vunpack.c.l.b16 %v308
    %v377 = vunpack.c.l.b16 %v309
    %v378 = vunpack.c.l.b16 %v310
    %v379 = vunpack.c.l.b16 %v311
    %v380 = vunpack.c.l.b16 %v312
    %v381 = vunpack.c.l.b16 %v313
    %v382 = vunpack.c.l.b16 %v314
    %v383 = vunpack.c.l.b16 %v315
    %v384 = vunpack.c.l.b16 %v316
    %v385 = vunpack.c.l.b16 %v317
    %v386 = vunpack.c.l.b16 %v318
    %v387 = vunpack.c.l.b16 %v319
    %v388 = vunpack.c.l.b16 %v320
    %v389 = vunpack.c.l.b16 %v321
    %v390 = vunpack.c.l.b16 %v322
    %v391 = vunpack.c.l.b16 %v323
    %v392 = vunpack.c.l.b16 %v324
    %v393 = vunpack.c.l.b16 %v325
    %v394 = vunpack.c.l.b16 %v326
    %v395 = vunpack.c.l.b16 %v327
    %v396 = vunpack.c.l.b16 %v328
    %v397 = vunpack.c.l.b16 %v329
    %v398 = vunpack.c.l.b16 %v330
    %v399 = vunpack.c.l.b16 %v331
    %v400 = vunpack.c.l.b16 %v332
    %v401 = vunpack.c.l.b16 %v333
    %v402 = vunpack.c.l.b16 %v334
    %v403 = vunpack.c.l.b16 %v335
    %v404 = vunpack.c.l.b16 %v336
    %v405 = vunpack.c.l.b16 %v337
    %v406 = vunpack.c.l.b16 %v338
    %v407 = vpack.c.b16 %v376, %v375
    %v408 = vpack.c.b16 %v378, %v377
    %v409 = vpack.c.b16 %v380, %v379
    %v410 = vpack.c.b16 %v382, %v381
    %v411 = vpack.c.b16 %v384, %v383
    %v412 = vpack.c.b16 %v386, %v385
    %v413 = vpack.c.b16 %v388, %v387
    %v414 = vpack.c.b16 %v390, %v389
    %v415 = vpack.c.b16 %v392, %v391
    %v416 = vpack.c.b16 %v394, %v393
    %v417 = vpack.c.b16 %v396, %v395
    %v418 = vpack.c.b16 %v398, %v397
    %v419 = vpack.c.b16 %v400, %v399
    %v420 = vpack.c.b16 %v402, %v401
    %v421 = vpack.c.b16 %v404, %v403
    %v422 = vpack.c.b16 %v406, %v405
    %439 = vmatpush.bf16.msra.mxu0 %v414
    %440 = vmatpush.bf16.msra.mxu0 %v413
    %441 = vmatpush.bf16.msra.mxu0 %v412
    %442 = vmatpush.bf16.msra.mxu0 %v411
    %443 = vmatpush.bf16.msra.mxu0 %v410
    %444 = vmatpush.bf16.msra.mxu0 %v409
    %445 = vmatpush.bf16.msra.mxu0 %v408
    %446 = vmatpush.bf16.msra.mxu0 %v407
    %447 = vmatmul.bf16.gmra.mxu0 %v305
    %v448 = vpop.f32.mrf.mxu0
    %v449 = vadd.f32 %v341, %v448
    %v450 = vpop.f32.mrf.mxu0
    %v451 = vadd.f32 %v341, %v450
    %452 = vdwg.mxu0
    %453 = vmatpush.bf16.msra.mxu0 %v422
    %454 = vmatpush.bf16.msra.mxu0 %v421
    %455 = vmatpush.bf16.msra.mxu0 %v420
    %456 = vmatpush.bf16.msra.mxu0 %v419
    %457 = vmatpush.bf16.msra.mxu0 %v418
    %458 = vmatpush.bf16.msra.mxu0 %v417
    %459 = vmatpush.bf16.msra.mxu0 %v416
    %460 = vmatpush.bf16.msra.mxu0 %v415
    %461 = vmatmul.bf16.gmra.mxu0 %v306
    %v462 = vpop.f32.mrf.mxu0
    %v463 = vadd.f32 %v449, %v462
    %v464 = vpop.f32.mrf.mxu0
    %v465 = vadd.f32 %v451, %v464
    %466 = vdwg.mxu0
    %v467 = vadd.f32 %v463, %v82
    %v468 = vadd.f32 %v465, %v83
    %469 = vst [vmem:[#allocation10] sm:$0xff] %v467
    %470 = vst [vmem:[#allocation10 + $0x8] sm:$0xff] %v468
    // Predicated region
    $region38: #{tpu_custom_call.1} parent=1 // pred_check
      _
    $region39: #{tpu_custom_call.1} parent=1 // pred_check_branch
      %472 = sbr.rel (0) target = $region41
    $region40: #{tpu_custom_call.1} parent=1 // pred_region
      %474 = vsyncadd [#allocation4], 0
      %s475 = sshll.u32 [#allocation10], 4
      %s476 = int_to_ptr.vmem [resolvable:$true] %s475
      %s477 = sshll.u32 %s5, 4
      %s478 = int_to_ptr.hbm [resolvable:$true] %s477
      %483 = dma.vmem_to_hbm [thread:$0]  %s476, 256, %s478, [#allocation4], 128, 128, 8
    $region41: #{tpu_custom_call.1} parent=1 // pred_fallthru
      _
    // Predicated region
    $region42: #{tpu_custom_call.1} parent=1 // pred_check
      _
    $region43: #{tpu_custom_call.1} parent=1 // pred_check_branch
      %485 = sbr.rel (0) target = $region45
    $region44: #{tpu_custom_call.1} parent=1 // pred_region
      %487 = dma.done [#allocation4], 256
    $region45: #{tpu_custom_call.1} parent=1 // pred_fallthru
      _
    %488 = vsyncpa [#allocation3], 1
    %489 = vsyncpa [#allocation6], 1
    %490 = vsyncpa [#allocation9], 1
    %491 = vsyncpa [#allocation4], 1

</llo_original>
